<compile_context>
chip_gen: v5e
topology: v5e:2x2
jax: 0.10.0
libtpu: 0.0.40
codegen_flags: <defaults>
</compile_context>

<pallas_src>
import jax
import jax.numpy as jnp
from jax.experimental import pallas as pl
from jax.experimental.pallas import tpu as pltpu


def _round_up(x, m):
    return ((x + m - 1) // m) * m


def rw_mlp_kernel(obs_ref, acs_ref, w1o_ref, w1a_ref, b1_ref,
                  w2_ref, b2_ref, w3_ref, b3_ref, o_ref):
    """Fused 3-layer MLP, in-kernel one-hot, folded reward affine.

    obs_ref : [TB, obs_dim] f32/bf16  (batch tile, MXU operand dtype)
    acs_ref : [TB, 1]       i32       (discrete action indices)
    w1o_ref : [obs_dim, H]  f32/bf16  (W1 rows for obs features)
    w1a_ref : [A, H]        f32       (W1 rows for one-hot action features)
    b1_ref  : [1, H]        f32
    w2_ref  : [H, H] f32/bf16, b2_ref : [1, H] f32
    w3_ref  : [1, H] f32 = (W3 * rew_std).T   (de-norm folded into last layer)
    b3_ref  : [1, 1] f32 = b3 * rew_std + rew_mean
    o_ref   : [TB, 1] f32
    """
    a_dim = w1a_ref.shape[0]

    # Layer 1: obs part on the MXU (f32 accumulate), action (one-hot) part as
    # a per-action VPU select in f32.  Equivalent to
    # concat([obs, one_hot(acs)]) @ W1 + b1 without materializing the concat;
    # out-of-range indices contribute zero (same as jax.nn.one_hot).
    h1 = jnp.dot(obs_ref[...], w1o_ref[...],
                 preferred_element_type=jnp.float32) + b1_ref[...]
    acs = acs_ref[...]                                  # [TB, 1] int32
    for a in range(a_dim):                              # static, a_dim tiny
        h1 = h1 + jnp.where(acs == a, w1a_ref[a:a + 1, :], 0.0)
    h1 = jnp.maximum(h1, 0.0)

    # Layer 2 (cast activations to the weight dtype for the MXU; f32 acc).
    h2 = jnp.dot(h1.astype(w2_ref.dtype), w2_ref[...],
                 preferred_element_type=jnp.float32) + b2_ref[...]
    h2 = jnp.maximum(h2, 0.0)

    # Layer 3 (N=1): VPU broadcast-multiply + lane reduction instead of an MXU
    # matmul; reward de-normalization already folded into w3/b3.  Kept in f32.
    r = jnp.sum(h2 * w3_ref[...], axis=-1, keepdims=True) + b3_ref[...]
    o_ref[...] = r.astype(o_ref.dtype)


def rw_model_forward(obs, acs, params, rew_mean, rew_std, action_dim,
                     tile_b=2048, use_bf16=True):
    """JAX wrapper reproducing RWModel.forward with a batch-tiled Pallas kernel.

    use_bf16=True casts only the MXU operands (obs, W1_obs, h1, W2) to bf16
    with f32 accumulation; use_bf16=False is a bit-faithful f32 debug mode.
    """
    w1, b1, w2, b2, w3, b3 = params
    obs = obs.astype(jnp.float32)
    acs = acs.astype(jnp.int32).reshape(-1, 1)

    B, obs_dim = obs.shape
    hidden = w2.shape[0]

    # Split W1 -> obs rows + action rows (fuses one-hot / concat into kernel).
    w1_obs = w1[:obs_dim]
    w1_act = w1[obs_dim:obs_dim + action_dim].astype(jnp.float32)

    # Constant-fold the reward de-normalization into the last layer.
    w3_row = (w3 * rew_std).reshape(1, hidden).astype(jnp.float32)
    b3_fold = (b3 * rew_std + rew_mean).astype(jnp.float32).reshape(1, 1)

    # MXU operand dtype (biases / select / final reduce stay f32).
    mm_dtype = jnp.bfloat16 if use_bf16 else jnp.float32
    obs_mm = obs.astype(mm_dtype)
    w1o_mm = w1_obs.astype(mm_dtype)
    w2_mm = w2.astype(mm_dtype)
    b1 = b1.reshape(1, hidden).astype(jnp.float32)
    b2 = b2.reshape(1, hidden).astype(jnp.float32)

    # Batch tile: multiple of 8, capped at tile_b (2048 default keeps the
    # lane-padded double-buffered tiles far below the 32 MiB scoped VMEM
    # budget on every TPU generation, incl. v7x's 64 MiB physical).
    tb = min(tile_b, _round_up(B, 8))
    # v7x megacore: make sure the "parallel" grid has >= 2 steps whenever the
    # batch would otherwise fit in a single tile (near-free 2x on v7x).
    if pl.cdiv(B, tb) < 2 and B > 8:
        tb = _round_up(pl.cdiv(B, 2), 8)
    grid = (pl.cdiv(B, tb),)          # ragged last block handled by Pallas;
                                      # no wrapper-side jnp.pad HBM copy.

    def batch_spec(feat):
        return pl.BlockSpec((tb, feat), lambda i: (i, 0))

    def resident(arr):
        # Full-array block, same block index every grid step -> stays in VMEM.
        return pl.BlockSpec(arr.shape, lambda i: (0, 0))

    out = pl.pallas_call(
        rw_mlp_kernel,
        out_shape=jax.ShapeDtypeStruct((B, 1), jnp.float32),
        grid=grid,
        in_specs=[
            batch_spec(obs_dim),     # obs tile (bf16 or f32)
            batch_spec(1),           # acs tile (int32 indices)
            resident(w1o_mm),
            resident(w1_act),
            resident(b1),
            resident(w2_mm),
            resident(b2),
            resident(w3_row),
            resident(b3_fold),
        ],
        out_specs=batch_spec(1),
        compiler_params=pltpu.CompilerParams(
            dimension_semantics=("parallel",),
            vmem_limit_bytes=32 * 1024 * 1024,
        ),
    )(obs_mm, acs, w1o_mm, w1_act, b1, w2_mm, b2, w3_row, b3_fold)

    return out


def init_params(key, in_dim, net_arch, out_dim):
    """Deterministic Linear-layer init (shapes match create_mlp(in, 1, [64,64]))."""
    dims = [in_dim] + list(net_arch) + [out_dim]
    params = []
    for i in range(len(dims) - 1):
        key, k_w, k_b = jax.random.split(key, 3)
        fan_in = dims[i]
        bound = 1.0 / jnp.sqrt(fan_in)
        w = jax.random.uniform(k_w, (dims[i], dims[i + 1]),
                               minval=-bound, maxval=bound, dtype=jnp.float32)
        b = jax.random.uniform(k_b, (1, dims[i + 1]),
                               minval=-bound, maxval=bound, dtype=jnp.float32)
        params.extend([w, b])
    return tuple(params)


def _reference_forward(obs, acs, params, rew_mean, rew_std, action_dim):
    """Pure-JAX f32 reference reproducing the PyTorch forward exactly."""
    acs_oh = jnp.squeeze(jax.nn.one_hot(acs, action_dim, dtype=jnp.float32), 1)
    x = jnp.concatenate([obs.astype(jnp.float32), acs_oh], axis=1)
    w1, b1, w2, b2, w3, b3 = params
    h1 = jnp.maximum(x @ w1 + b1, 0.0)
    h2 = jnp.maximum(h1 @ w2 + b2, 0.0)
    r = h2 @ w3 + b3
    return r * rew_std + rew_mean


if __name__ == "__main__":
    key = jax.random.PRNGKey(0)

    obs_dim = 16
    action_dim = 4
    net_arch = [64, 64]
    rew_mean = 0.5
    rew_std = 2.0

    k_par, k_data = jax.random.split(key)
    params = init_params(k_par, obs_dim + action_dim, net_arch, 1)

    # Small single-tile batch + a larger non-multiple-of-tile batch (exercises
    # the ragged cdiv grid, the megacore tile split, and weight residency).
    for batch in (8, 300):
        k_data, k_obs, k_acs = jax.random.split(k_data, 3)
        obs = jax.random.normal(k_obs, (batch, obs_dim), dtype=jnp.float32)
        acs = jax.random.randint(k_acs, (batch, 1), 0, action_dim,
                                 dtype=jnp.int32)

        ref = _reference_forward(obs, acs, params, rew_mean, rew_std,
                                 action_dim)

        # f32 debug mode: bit-faithful semantics check vs the exact reference.
        out_f32 = jax.block_until_ready(
            rw_model_forward(obs, acs, params, rew_mean, rew_std, action_dim,
                             use_bf16=False))
        assert out_f32.shape == (batch, 1)
        assert jnp.allclose(out_f32, ref, atol=1e-4, rtol=1e-4), \
            f"f32 kernel mismatch vs reference at B={batch}"

        # Default perf mode: bf16 MXU operands, f32 accumulation -> relaxed
        # tolerance vs the f32 reference (bf16 rounding through two matmuls).
        out_bf16 = jax.block_until_ready(
            rw_model_forward(obs, acs, params, rew_mean, rew_std, action_dim,
                             use_bf16=True))
        assert out_bf16.shape == (batch, 1)
        assert jnp.allclose(out_bf16, ref, atol=1e-1, rtol=1e-1), \
            f"bf16 kernel mismatch vs reference at B={batch}"

    print("KERNEL_OK")
</pallas_src>

<mosaic_0001>
module attributes {stable_mosaic.version = 11 : i64} {
  func.func @rw_mlp_kernel(%arg0: i32, %arg1: memref<8x16xf32, #tpu.memory_space<vmem>>, %arg2: memref<8x1xi32, #tpu.memory_space<vmem>>, %arg3: memref<16x64xf32, #tpu.memory_space<vmem>>, %arg4: memref<4x64xf32, #tpu.memory_space<vmem>>, %arg5: memref<1x64xf32, #tpu.memory_space<vmem>>, %arg6: memref<64x64xf32, #tpu.memory_space<vmem>>, %arg7: memref<1x64xf32, #tpu.memory_space<vmem>>, %arg8: memref<1x64xf32, #tpu.memory_space<vmem>>, %arg9: memref<1x1xf32, #tpu.memory_space<vmem>>, %arg10: memref<8x1xf32, #tpu.memory_space<vmem>>) attributes {dimension_semantics = [#tpu.dimension_semantics<parallel>], iteration_bounds = array<i64: 1>, scalar_prefetch = 0 : i64, scratch_operands = 0 : i64, tpu.core_type = #tpu.core_type<tc>, window_params = [{transform_indices = @transform_0, window_bounds = array<i64: 8, 16>}, {transform_indices = @transform_1, window_bounds = array<i64: 8, 1>}, {pipeline_mode = #tpu.pipeline_mode<synchronous>, transform_indices = @transform_2, window_bounds = array<i64: 16, 64>}, {pipeline_mode = #tpu.pipeline_mode<synchronous>, transform_indices = @transform_3, window_bounds = array<i64: 4, 64>}, {pipeline_mode = #tpu.pipeline_mode<synchronous>, transform_indices = @transform_4, window_bounds = array<i64: 1, 64>}, {pipeline_mode = #tpu.pipeline_mode<synchronous>, transform_indices = @transform_5, window_bounds = array<i64: 64, 64>}, {pipeline_mode = #tpu.pipeline_mode<synchronous>, transform_indices = @transform_6, window_bounds = array<i64: 1, 64>}, {pipeline_mode = #tpu.pipeline_mode<synchronous>, transform_indices = @transform_7, window_bounds = array<i64: 1, 64>}, {pipeline_mode = #tpu.pipeline_mode<synchronous>, transform_indices = @transform_8, window_bounds = array<i64: 1, 1>}, {transform_indices = @transform_9, window_bounds = array<i64: 8, 1>}]} {
    %c0 = arith.constant 0 : index
    %c0_0 = arith.constant 0 : index
    %0 = vector.load %arg1[%c0, %c0_0] : memref<8x16xf32, #tpu.memory_space<vmem>>, vector<8x16xf32>
    %c0_1 = arith.constant 0 : index
    %c0_2 = arith.constant 0 : index
    %1 = vector.load %arg3[%c0_1, %c0_2] : memref<16x64xf32, #tpu.memory_space<vmem>>, vector<16x64xf32>
    %cst = arith.constant dense<0.000000e+00> : vector<8x64xf32>
    %2 = tpu.matmul %0, %1, %cst {dimension_numbers = #tpu.dot_dimension_numbers<[1], [0], [0], [1], [0, 0, 1, 1], [], []>} : vector<8x16xf32>, vector<16x64xf32>, vector<8x64xf32> -> vector<8x64xf32>
    %c0_3 = arith.constant 0 : index
    %c0_4 = arith.constant 0 : index
    %3 = vector.load %arg5[%c0_3, %c0_4] : memref<1x64xf32, #tpu.memory_space<vmem>>, vector<1x64xf32>
    %4 = vector.broadcast %3 : vector<1x64xf32> to vector<8x64xf32>
    %5 = arith.addf %2, %4 : vector<8x64xf32>
    %c0_5 = arith.constant 0 : index
    %c0_6 = arith.constant 0 : index
    %6 = vector.load %arg2[%c0_5, %c0_6] : memref<8x1xi32, #tpu.memory_space<vmem>>, vector<8x1xi32>
    %c0_i32 = arith.constant 0 : i32
    %7 = vector.broadcast %c0_i32 : i32 to vector<8x1xi32>
    %8 = arith.cmpi eq, %6, %7 : vector<8x1xi32>
    %c0_7 = arith.constant 0 : index
    %c0_8 = arith.constant 0 : index
    %9 = vector.load %arg4[%c0_7, %c0_8] : memref<4x64xf32, #tpu.memory_space<vmem>>, vector<1x64xf32>
    %cst_9 = arith.constant 0.000000e+00 : f32
    %10 = vector.shape_cast %8 : vector<8x1xi1> to vector<8x1xi1>
    %11 = vector.broadcast %10 : vector<8x1xi1> to vector<8x64xi1>
    %12 = vector.shape_cast %9 : vector<1x64xf32> to vector<1x64xf32>
    %13 = vector.broadcast %12 : vector<1x64xf32> to vector<8x64xf32>
    %14 = vector.broadcast %cst_9 : f32 to vector<8x64xf32>
    %15 = arith.select %11, %13, %14 : vector<8x64xi1>, vector<8x64xf32>
    %16 = arith.addf %5, %15 : vector<8x64xf32>
    %c1_i32 = arith.constant 1 : i32
    %17 = vector.broadcast %c1_i32 : i32 to vector<8x1xi32>
    %18 = arith.cmpi eq, %6, %17 : vector<8x1xi32>
    %c1 = arith.constant 1 : index
    %c0_10 = arith.constant 0 : index
    %19 = vector.load %arg4[%c1, %c0_10] : memref<4x64xf32, #tpu.memory_space<vmem>>, vector<1x64xf32>
    %cst_11 = arith.constant 0.000000e+00 : f32
    %20 = vector.shape_cast %18 : vector<8x1xi1> to vector<8x1xi1>
    %21 = vector.broadcast %20 : vector<8x1xi1> to vector<8x64xi1>
    %22 = vector.shape_cast %19 : vector<1x64xf32> to vector<1x64xf32>
    %23 = vector.broadcast %22 : vector<1x64xf32> to vector<8x64xf32>
    %24 = vector.broadcast %cst_11 : f32 to vector<8x64xf32>
    %25 = arith.select %21, %23, %24 : vector<8x64xi1>, vector<8x64xf32>
    %26 = arith.addf %16, %25 : vector<8x64xf32>
    %c2_i32 = arith.constant 2 : i32
    %27 = vector.broadcast %c2_i32 : i32 to vector<8x1xi32>
    %28 = arith.cmpi eq, %6, %27 : vector<8x1xi32>
    %c2 = arith.constant 2 : index
    %c0_12 = arith.constant 0 : index
    %29 = vector.load %arg4[%c2, %c0_12] : memref<4x64xf32, #tpu.memory_space<vmem>>, vector<1x64xf32>
    %cst_13 = arith.constant 0.000000e+00 : f32
    %30 = vector.shape_cast %28 : vector<8x1xi1> to vector<8x1xi1>
    %31 = vector.broadcast %30 : vector<8x1xi1> to vector<8x64xi1>
    %32 = vector.shape_cast %29 : vector<1x64xf32> to vector<1x64xf32>
    %33 = vector.broadcast %32 : vector<1x64xf32> to vector<8x64xf32>
    %34 = vector.broadcast %cst_13 : f32 to vector<8x64xf32>
    %35 = arith.select %31, %33, %34 : vector<8x64xi1>, vector<8x64xf32>
    %36 = arith.addf %26, %35 : vector<8x64xf32>
    %c3_i32 = arith.constant 3 : i32
    %37 = vector.broadcast %c3_i32 : i32 to vector<8x1xi32>
    %38 = arith.cmpi eq, %6, %37 : vector<8x1xi32>
    %c3 = arith.constant 3 : index
    %c0_14 = arith.constant 0 : index
    %39 = vector.load %arg4[%c3, %c0_14] : memref<4x64xf32, #tpu.memory_space<vmem>>, vector<1x64xf32>
    %cst_15 = arith.constant 0.000000e+00 : f32
    %40 = vector.shape_cast %38 : vector<8x1xi1> to vector<8x1xi1>
    %41 = vector.broadcast %40 : vector<8x1xi1> to vector<8x64xi1>
    %42 = vector.shape_cast %39 : vector<1x64xf32> to vector<1x64xf32>
    %43 = vector.broadcast %42 : vector<1x64xf32> to vector<8x64xf32>
    %44 = vector.broadcast %cst_15 : f32 to vector<8x64xf32>
    %45 = arith.select %41, %43, %44 : vector<8x64xi1>, vector<8x64xf32>
    %46 = arith.addf %36, %45 : vector<8x64xf32>
    %cst_16 = arith.constant 0.000000e+00 : f32
    %47 = vector.broadcast %cst_16 : f32 to vector<8x64xf32>
    %48 = arith.maximumf %46, %47 : vector<8x64xf32>
    %c0_17 = arith.constant 0 : index
    %c0_18 = arith.constant 0 : index
    %49 = vector.load %arg6[%c0_17, %c0_18] : memref<64x64xf32, #tpu.memory_space<vmem>>, vector<64x64xf32>
    %cst_19 = arith.constant dense<0.000000e+00> : vector<8x64xf32>
    %50 = tpu.matmul %48, %49, %cst_19 {dimension_numbers = #tpu.dot_dimension_numbers<[1], [0], [0], [1], [0, 0, 1, 1], [], []>} : vector<8x64xf32>, vector<64x64xf32>, vector<8x64xf32> -> vector<8x64xf32>
    %c0_20 = arith.constant 0 : index
    %c0_21 = arith.constant 0 : index
    %51 = vector.load %arg7[%c0_20, %c0_21] : memref<1x64xf32, #tpu.memory_space<vmem>>, vector<1x64xf32>
    %52 = vector.broadcast %51 : vector<1x64xf32> to vector<8x64xf32>
    %53 = arith.addf %50, %52 : vector<8x64xf32>
    %cst_22 = arith.constant 0.000000e+00 : f32
    %54 = vector.broadcast %cst_22 : f32 to vector<8x64xf32>
    %55 = arith.maximumf %53, %54 : vector<8x64xf32>
    %c0_23 = arith.constant 0 : index
    %c0_24 = arith.constant 0 : index
    %56 = vector.load %arg8[%c0_23, %c0_24] : memref<1x64xf32, #tpu.memory_space<vmem>>, vector<1x64xf32>
    %57 = vector.broadcast %56 : vector<1x64xf32> to vector<8x64xf32>
    %58 = arith.mulf %55, %57 : vector<8x64xf32>
    %cst_25 = arith.constant dense<0.000000e+00> : vector<8xf32>
    %59 = vector.multi_reduction <add>, %58, %cst_25 [1] : vector<8x64xf32> to vector<8xf32>
    %60 = vector.shape_cast %59 : vector<8xf32> to vector<8x1xf32>
    %c0_26 = arith.constant 0 : index
    %c0_27 = arith.constant 0 : index
    %61 = vector.load %arg9[%c0_26, %c0_27] : memref<1x1xf32, #tpu.memory_space<vmem>>, vector<1x1xf32>
    %62 = vector.broadcast %61 : vector<1x1xf32> to vector<8x1xf32>
    %63 = arith.addf %60, %62 : vector<8x1xf32>
    %c0_28 = arith.constant 0 : index
    %c0_29 = arith.constant 0 : index
    %64 = vector.load %arg10[%c0_28, %c0_29] : memref<8x1xf32, #tpu.memory_space<vmem>>, vector<8x1xf32>
    tpu.vector_store %arg10[%c0_28, %c0_29], %63 {strides = array<i32>} : memref<8x1xf32, #tpu.memory_space<vmem>>, vector<8x1xf32>,
    return
  }
  func.func @transform_0(%arg0: i32) -> (i32, i32) {
    %c0_i32 = arith.constant 0 : i32
    %c0_i32_0 = arith.constant 0 : i32
    return %arg0, %c0_i32 : i32, i32
  }
  func.func @transform_1(%arg0: i32) -> (i32, i32) {
    %c0_i32 = arith.constant 0 : i32
    %c0_i32_0 = arith.constant 0 : i32
    return %arg0, %c0_i32 : i32, i32
  }
  func.func @transform_2(%arg0: i32) -> (i32, i32) {
    %c0_i32 = arith.constant 0 : i32
    %c0_i32_0 = arith.constant 0 : i32
    %c0_i32_1 = arith.constant 0 : i32
    return %c0_i32, %c0_i32_0 : i32, i32
  }
  func.func @transform_3(%arg0: i32) -> (i32, i32) {
    %c0_i32 = arith.constant 0 : i32
    %c0_i32_0 = arith.constant 0 : i32
    %c0_i32_1 = arith.constant 0 : i32
    return %c0_i32, %c0_i32_0 : i32, i32
  }
  func.func @transform_4(%arg0: i32) -> (i32, i32) {
    %c0_i32 = arith.constant 0 : i32
    %c0_i32_0 = arith.constant 0 : i32
    %c0_i32_1 = arith.constant 0 : i32
    return %c0_i32, %c0_i32_0 : i32, i32
  }
  func.func @transform_5(%arg0: i32) -> (i32, i32) {
    %c0_i32 = arith.constant 0 : i32
    %c0_i32_0 = arith.constant 0 : i32
    %c0_i32_1 = arith.constant 0 : i32
    return %c0_i32, %c0_i32_0 : i32, i32
  }
  func.func @transform_6(%arg0: i32) -> (i32, i32) {
    %c0_i32 = arith.constant 0 : i32
    %c0_i32_0 = arith.constant 0 : i32
    %c0_i32_1 = arith.constant 0 : i32
    return %c0_i32, %c0_i32_0 : i32, i32
  }
  func.func @transform_7(%arg0: i32) -> (i32, i32) {
    %c0_i32 = arith.constant 0 : i32
    %c0_i32_0 = arith.constant 0 : i32
    %c0_i32_1 = arith.constant 0 : i32
    return %c0_i32, %c0_i32_0 : i32, i32
  }
  func.func @transform_8(%arg0: i32) -> (i32, i32) {
    %c0_i32 = arith.constant 0 : i32
    %c0_i32_0 = arith.constant 0 : i32
    %c0_i32_1 = arith.constant 0 : i32
    return %c0_i32, %c0_i32_0 : i32, i32
  }
  func.func @transform_9(%arg0: i32) -> (i32, i32) {
    %c0_i32 = arith.constant 0 : i32
    %c0_i32_0 = arith.constant 0 : i32
    return %arg0, %c0_i32 : i32, i32
  }
}

</mosaic_0001>

<llo_original>
// kernel: tpu_custom_call.1
$region0: #{tpu_custom_call.1}
  #allocation0 [shape = 'u32[]', space=smem, size = 0x4, offset = 0x4, fixed_abs, tag = 'smem constant byte address 0x4 - core index']
  #allocation1 [shape = 'u32[72,128]{1,0:T(1,128)}', space=vmem, size = 0x9000, scoped, tag = 'internal scratch']
  #allocation2 [shape = 'f32[1,1]{1,0:T(1,128)S(1)}', space=vmem, size = 0x200, scoped, tag = 'scoped memory for tpu_custom_call.1']
  %s0 = inlined_call_operand.vmem [shape: f32[8,16], index: 0, kind: input, shape index: {}]
  %s1 = inlined_call_operand.vmem [shape: s32[8,1], index: 1, kind: input, shape index: {}]
  %s2 = inlined_call_operand.hbm [shape: f32[16,64], index: 2, kind: input, shape index: {}]
  %s3 = inlined_call_operand.hbm [shape: f32[4,64], index: 3, kind: input, shape index: {}]
  %s4 = inlined_call_operand.vmem [shape: f32[1,64], index: 4, kind: input, shape index: {}]
  %s5 = inlined_call_operand.hbm [shape: f32[64,64], index: 5, kind: input, shape index: {}]
  %s6 = inlined_call_operand.vmem [shape: f32[1,64], index: 6, kind: input, shape index: {}]
  %s7 = inlined_call_operand.vmem [shape: f32[1,64], index: 7, kind: input, shape index: {}]
  %s8 = inlined_call_operand.<no memory space> [shape: f32[1,1], index: 8, kind: input, shape index: {}]
  %s9 = inlined_call_operand.vmem [shape: f32[8,1], index: 9, kind: output, shape index: {}]
  %s10 = sld [smem:[#allocation0]]
  $region58: #{tpu_custom_call.1} parent=0
    _
  %s12 = ssub.s32 1, %s10
  %s13 = scalar_select 0, %s12, %s10
  %v14 = vstv %s8
  %15 = vst [vmem:[#allocation2] sm:$0x1] %v14
  $region1: #{tpu_custom_call.1} parent=0
    #allocation3 [shape = 'u8[8192]{0}', space=vmem, size = 0x2000, scoped, tag = 'input window, operand 2, single buffered']
    #allocation4 [shape = 's32[1]{0}', space=sflag, size = 0x4, scoped, tag = 'scoped memory for tpu_custom_call.1']
    #allocation5 [shape = 'u8[2048]{0}', space=vmem, size = 0x800, scoped, tag = 'input window, operand 3, single buffered']
    #allocation6 [shape = 's32[1]{0}', space=sflag, size = 0x4, scoped, tag = 'scoped memory for tpu_custom_call.1']
    #allocation7 [shape = 'u8[32768]{0}', space=vmem, size = 0x8000, scoped, tag = 'input window, operand 5, single buffered']
    %16 = vsyncpa [#allocation4], 0
    %17 = vsyncpa [#allocation6], 0
    // Predicated region
    $region2: #{tpu_custom_call.1} parent=1 // pred_check
      _
    $region3: #{tpu_custom_call.1} parent=1 // pred_check_branch
      %19 = sbr.rel (0) target = $region5
    $region4: #{tpu_custom_call.1} parent=1 // pred_region
      _
    $region5: #{tpu_custom_call.1} parent=1 // pred_fallthru
      _
    // Predicated region
    $region6: #{tpu_custom_call.1} parent=1 // pred_check
      _
    $region7: #{tpu_custom_call.1} parent=1 // pred_check_branch
      %21 = sbr.rel (0) target = $region9
    $region8: #{tpu_custom_call.1} parent=1 // pred_region
      _
    $region9: #{tpu_custom_call.1} parent=1 // pred_fallthru
      _
    // Predicated region
    $region10: #{tpu_custom_call.1} parent=1 // pred_check
      _
    $region11: #{tpu_custom_call.1} parent=1 // pred_check_branch
      %23 = sbr.rel (0) target = $region13
    $region12: #{tpu_custom_call.1} parent=1 // pred_region
      %25 = vsyncadd [#allocation4], 0
      %s26 = sshll.u32 %s2, 4
      %s27 = int_to_ptr.hbm [resolvable:$true] %s26
      %s28 = sshll.u32 [#allocation3], 4
      %s29 = int_to_ptr.vmem [resolvable:$true] %s28
      %34 = dma.hbm_to_vmem [thread:$0]  %s27, 256, %s29, [#allocation4], 128, 128, 8
    $region13: #{tpu_custom_call.1} parent=1 // pred_fallthru
      _
    // Predicated region
    $region14: #{tpu_custom_call.1} parent=1 // pred_check
      _
    $region15: #{tpu_custom_call.1} parent=1 // pred_check_branch
      %36 = sbr.rel (0) target = $region17
    $region16: #{tpu_custom_call.1} parent=1 // pred_region
      %38 = vsyncadd [#allocation6], 0
      %s40 = sshll.u32 %s3, 4
      %s41 = int_to_ptr.hbm [resolvable:$true] %s40
      %s42 = sshll.u32 [#allocation5], 4
      %s43 = int_to_ptr.vmem [resolvable:$true] %s42
      %45 = dma.hbm_to_vmem [thread:$0]  %s41, 64, %s43, [#allocation6]
    $region17: #{tpu_custom_call.1} parent=1 // pred_fallthru
      _
    // Predicated region
    $region18: #{tpu_custom_call.1} parent=1 // pred_check
      _
    $region19: #{tpu_custom_call.1} parent=1 // pred_check_branch
      %47 = sbr.rel (0) target = $region21
    $region20: #{tpu_custom_call.1} parent=1 // pred_region
      _
    $region21: #{tpu_custom_call.1} parent=1 // pred_fallthru
      _
    // Predicated region
    $region22: #{tpu_custom_call.1} parent=1 // pred_check
      _
    $region23: #{tpu_custom_call.1} parent=1 // pred_check_branch
      %49 = sbr.rel (0) target = $region25
    $region24: #{tpu_custom_call.1} parent=1 // pred_region
      %51 = vsyncadd [#allocation6], 0
      %s52 = sshll.u32 %s5, 4
      %s53 = int_to_ptr.hbm [resolvable:$true] %s52
      %s54 = sshll.u32 [#allocation7], 4
      %s55 = int_to_ptr.vmem [resolvable:$true] %s54
      %60 = dma.hbm_to_vmem [thread:$0]  %s53, 1024, %s55, [#allocation6], 128, 128, 8
    $region25: #{tpu_custom_call.1} parent=1 // pred_fallthru
      _
    // Predicated region
    $region26: #{tpu_custom_call.1} parent=1 // pred_check
      _
    $region27: #{tpu_custom_call.1} parent=1 // pred_check_branch
      %62 = sbr.rel (0) target = $region29
    $region28: #{tpu_custom_call.1} parent=1 // pred_region
      _
    $region29: #{tpu_custom_call.1} parent=1 // pred_fallthru
      _
    // Predicated region
    $region30: #{tpu_custom_call.1} parent=1 // pred_check
      _
    $region31: #{tpu_custom_call.1} parent=1 // pred_check_branch
      %64 = sbr.rel (0) target = $region33
    $region32: #{tpu_custom_call.1} parent=1 // pred_region
      _
    $region33: #{tpu_custom_call.1} parent=1 // pred_fallthru
      _
    // Predicated region
    $region34: #{tpu_custom_call.1} parent=1 // pred_check
      _
    $region35: #{tpu_custom_call.1} parent=1 // pred_check_branch
      %66 = sbr.rel (0) target = $region37
    $region36: #{tpu_custom_call.1} parent=1 // pred_region
      _
    $region37: #{tpu_custom_call.1} parent=1 // pred_fallthru
      _
    // Predicated region
    $region38: #{tpu_custom_call.1} parent=1 // pred_check
      _
    $region39: #{tpu_custom_call.1} parent=1 // pred_check_branch
      %68 = sbr.rel (0) target = $region41
    $region40: #{tpu_custom_call.1} parent=1 // pred_region
      %70 = dma.done [#allocation4], 256
    $region41: #{tpu_custom_call.1} parent=1 // pred_fallthru
      _
    // Predicated region
    $region42: #{tpu_custom_call.1} parent=1 // pred_check
      _
    $region43: #{tpu_custom_call.1} parent=1 // pred_check_branch
      %72 = sbr.rel (0) target = $region45
    $region44: #{tpu_custom_call.1} parent=1 // pred_region
      %74 = dma.done [#allocation6], 64
    $region45: #{tpu_custom_call.1} parent=1 // pred_fallthru
      _
    // Predicated region
    $region46: #{tpu_custom_call.1} parent=1 // pred_check
      _
    $region47: #{tpu_custom_call.1} parent=1 // pred_check_branch
      %76 = sbr.rel (0) target = $region49
    $region48: #{tpu_custom_call.1} parent=1 // pred_region
      %78 = dma.done [#allocation6], 1024
    $region49: #{tpu_custom_call.1} parent=1 // pred_fallthru
      _
    %v79 = vld [vmem:[%s0] sm:$0xff]
    %v80 = vld [vmem:[#allocation3] sm:$0xff]
    %v81 = vld [vmem:[#allocation3 + $0x8] sm:$0xff]
    %v82 = vld [vmem:[%s4] sm:$0x1]
    %v84 = vperm.slane %v82, 0
    %vm86 = vcmask 130048
    %v88 = vsel %vm86, %v79, 0
    %90 = vmatpush.msra.mxu0 0.0
    %91 = vmatpush.msra.mxu0 0.0
    %92 = vmatpush.msra.mxu0 0.0
    %93 = vmatpush.msra.mxu0 0.0
    %94 = vmatpush.msra.mxu0 0.0
    %95 = vmatpush.msra.mxu0 0.0
    %96 = vmatpush.msra.mxu0 0.0
    %97 = vmatpush.msra.mxu0 0.0
    %98 = vmatpush.msra.mxu0 0.0
    %99 = vmatpush.msra.mxu0 0.0
    %100 = vmatpush.msra.mxu0 0.0
    %101 = vmatpush.msra.mxu0 0.0
    %102 = vmatpush.msra.mxu0 0.0
    %103 = vmatpush.msra.mxu0 0.0
    %104 = vmatpush.msra.mxu0 %v81
    %105 = vmatpush.msra.mxu0 %v80
    %106 = vmatmul.f32.gmra.mxu0 %v88
    %v107 = vpop.f32.mrf.mxu0
    %v108 = vadd.f32 %v84, %v107
    %109 = vdwg.mxu0
    %v110 = vld [vmem:[%s1] sm:$0xff]
    %vm111 = vcmp.eq.s32.totalorder %v110, 0
    %v112 = vld [vmem:[#allocation5] sm:$0x1]
    %v113 = vsel %vm111, 1, 0
    %114 = vset.pattern.permute.xlu0 0
    %115 = vperm.xlu0 %114, %v113
    %v116 = vpop.permute.xlu0 %115
    %vm117 = vcmp.eq.s32.totalorder %v116, 1
    %v118 = vperm.slane %v112, 0
    %v119 = vsel %vm117, %v118, 0.0
    %v120 = vadd.f32 %v108, %v119
    %vm121 = vcmp.eq.s32.totalorder %v110, 1
    %v122 = vld [vmem:[#allocation5 + $0x1] sm:$0x1]
    %v123 = vsel %vm121, 1, 0
    %124 = vset.pattern.permute.xlu0 0
    %125 = vperm.xlu0 %124, %v123
    %v126 = vpop.permute.xlu0 %125
    %vm127 = vcmp.eq.s32.totalorder %v126, 1
    %v128 = vperm.slane %v122, 0
    %v129 = vsel %vm127, %v128, 0.0
    %v130 = vadd.f32 %v120, %v129
    %vm131 = vcmp.eq.s32.totalorder %v110, 2
    %v132 = vld [vmem:[#allocation5 + $0x2] sm:$0x1]
    %v133 = vsel %vm131, 1, 0
    %134 = vset.pattern.permute.xlu0 0
    %135 = vperm.xlu0 %134, %v133
    %v136 = vpop.permute.xlu0 %135
    %vm137 = vcmp.eq.s32.totalorder %v136, 1
    %v138 = vperm.slane %v132, 0
    %v139 = vsel %vm137, %v138, 0.0
    %v140 = vadd.f32 %v130, %v139
    %vm141 = vcmp.eq.s32.totalorder %v110, 3
    %v142 = vld [vmem:[#allocation5 + $0x3] sm:$0x1]
    %v143 = vsel %vm141, 1, 0
    %144 = vset.pattern.permute.xlu0 0
    %145 = vperm.xlu0 %144, %v143
    %v146 = vpop.permute.xlu0 %145
    %vm147 = vcmp.eq.s32.totalorder %v146, 1
    %v148 = vperm.slane %v142, 0
    %v149 = vsel %vm147, %v148, 0.0
    %v150 = vadd.f32 %v140, %v149
    %v151 = vmax.f32 %v150, 0.0
    %v152 = vld [vmem:[#allocation7] sm:$0xff]
    %v153 = vld [vmem:[#allocation7 + $0x8] sm:$0xff]
    %v154 = vld [vmem:[#allocation7 + $0x10] sm:$0xff]
    %v155 = vld [vmem:[#allocation7 + $0x18] sm:$0xff]
    %v156 = vld [vmem:[#allocation7 + $0x20] sm:$0xff]
    %v157 = vld [vmem:[#allocation7 + $0x28] sm:$0xff]
    %v158 = vld [vmem:[#allocation7 + $0x30] sm:$0xff]
    %v159 = vld [vmem:[#allocation7 + $0x38] sm:$0xff]
    %v160 = vld [vmem:[%s6] sm:$0x1]
    %v162 = vperm.slane %v160, 0
    %vm164 = vcmask 523264
    %v166 = vsel %vm164, %v151, 0
    %168 = vmatpush.msra.mxu0 0.0
    %169 = vmatpush.msra.mxu0 0.0
    %170 = vmatpush.msra.mxu0 0.0
    %171 = vmatpush.msra.mxu0 0.0
    %172 = vmatpush.msra.mxu0 0.0
    %173 = vmatpush.msra.mxu0 0.0
    %174 = vmatpush.msra.mxu0 0.0
    %175 = vmatpush.msra.mxu0 0.0
    %176 = vmatpush.msra.mxu0 %v159
    %177 = vmatpush.msra.mxu0 %v158
    %178 = vmatpush.msra.mxu0 %v157
    %179 = vmatpush.msra.mxu0 %v156
    %180 = vmatpush.msra.mxu0 %v155
    %181 = vmatpush.msra.mxu0 %v154
    %182 = vmatpush.msra.mxu0 %v153
    %183 = vmatpush.msra.mxu0 %v152
    %184 = vmatmul.f32.gmra.mxu0 %v166
    %v185 = vpop.f32.mrf.mxu0
    %v186 = vadd.f32 %v162, %v185
    %187 = vdwg.mxu0
    %v188 = vmax.f32 %v186, 0.0
    %v189 = vld [vmem:[%s7] sm:$0x1]
    %v191 = vperm.slane %v189, 0
    %v193 = vmul.f32 %v188, %v191
    %v194 = vsel %vm164, %v193, 0.0
    %195 = vadd.xlane.f32.xlu0 %v194
    %v196 = vpop.xlane.xlu0 %195
    %v197 = vld [vmem:[#allocation2] sm:$0x1]
    %v199 = vperm.slane %v197, 0
    %v201 = vadd.f32 %v196, %v199
    %vm202 = vcmask 7168
    %203 = vst.msk [vmem:[%s9] sm:$0xff] %vm202, %v201
    // Predicated region
    $region50: #{tpu_custom_call.1} parent=1 // pred_check
      _
    $region51: #{tpu_custom_call.1} parent=1 // pred_check_branch
      %205 = sbr.rel (0) target = $region53
    $region52: #{tpu_custom_call.1} parent=1 // pred_region
      _
    $region53: #{tpu_custom_call.1} parent=1 // pred_fallthru
      _
    // Predicated region
    $region54: #{tpu_custom_call.1} parent=1 // pred_check
      _
    $region55: #{tpu_custom_call.1} parent=1 // pred_check_branch
      %207 = sbr.rel (0) target = $region57
    $region56: #{tpu_custom_call.1} parent=1 // pred_region
      _
    $region57: #{tpu_custom_call.1} parent=1 // pred_fallthru
      _
    %208 = vsyncpa [#allocation4], 1
    %209 = vsyncpa [#allocation6], 1

</llo_original>
